<compile_context>
chip_gen: v6e
topology: v6e:2x2x1
jax: 0.10.0
libtpu: 0.0.40
codegen_flags: <defaults>
</compile_context>

<pallas_src>
import functools

import jax
import jax.numpy as jnp
from jax.experimental import pallas as pl
from jax.experimental.pallas import tpu as pltpu


def _round_up(x, m):
    return (x + m - 1) // m * m


def piformer_kernel(x_ref, m_ref, c_ref, out_ref):
    # x_ref:   (L, T)        f32  raw (un-normalized) input slab, one batch
    # m_ref:   (pred_len, L) f32  collapsed affine time-mixing matrix
    # c_ref:   (pred_len, 1) f32  collapsed affine bias (per output time step)
    # out_ref: (pred_len, T) f32  lane-dense output slab (T multiple of 128)
    x = x_ref[...]
    means = jnp.mean(x, axis=0, keepdims=True)             # (1, T)
    xc = x - means
    var = jnp.mean(xc * xc, axis=0, keepdims=True)         # unbiased=False
    stdev = jnp.sqrt(var + 1e-5)
    # (M @ (xc / std)) * std == M @ xc  -> skip materializing xn / re-scaling.
    dec = jnp.dot(m_ref[...], xc, preferred_element_type=jnp.float32)
    out_ref[...] = (dec + c_ref[...] * stdev + means).astype(out_ref.dtype)


def _build_effective_affine(W_base, b_base, coefs, *, period_len, seq_len,
                            pred_len):
    """Collapse the segment/level recursion into (M_eff, c_eff).

    x_res[j][k] = f^{sx-k+j}(seg_k),  f^m(z) = W^m z + b_m,  b_m = W b_{m-1}+b.
    dec block j = sum_k coefs[j,k] * x_res[j][k] + coefs[j,sx].
    """
    P = period_len
    sx = seq_len // P
    sy = pred_len // P
    W = W_base.astype(jnp.float32)
    b = b_base.astype(jnp.float32)
    coefs = coefs.astype(jnp.float32)

    max_pow = sx + sy - 1
    powers = [jnp.eye(P, dtype=jnp.float32)]       # W^m
    biases = [jnp.zeros((P,), jnp.float32)]        # b_m = sum_{i<m} W^i b
    for _ in range(max_pow):
        powers.append(W @ powers[-1])
        biases.append(W @ biases[-1] + b)

    m_rows, c_rows = [], []
    for j in range(sy):
        blocks = []
        c_blk = coefs[j, sx] * jnp.ones((P,), jnp.float32)
        for k in range(sx):
            m = sx - k + j
            blocks.append(coefs[j, k] * powers[m])
            c_blk = c_blk + coefs[j, k] * biases[m]
        m_rows.append(jnp.concatenate(blocks, axis=1))      # (P, L)
        c_rows.append(c_blk)
    M_eff = jnp.concatenate(m_rows, axis=0)                 # (pred_len, L)
    c_eff = jnp.concatenate(c_rows, axis=0).reshape(pred_len, 1)
    return M_eff, c_eff


@functools.partial(jax.jit, static_argnames=("period_len", "pred_len"))
def piformer_forward(x_enc, x_mark_enc, x_dec, x_mark_dec,
                     W_base, b_base, coefs, *, period_len, pred_len):
    # x_mark_enc / x_dec / x_mark_dec do not influence dec_out in the
    # SparseTSF/PITS branch of the torch module (x_dec only feeds a discarded
    # regression target), so they are accepted for API fidelity and ignored.
    del x_mark_enc, x_dec, x_mark_dec
    B, L, N = x_enc.shape

    M_eff, c_eff = _build_effective_affine(
        W_base, b_base, coefs, period_len=period_len, seq_len=L,
        pred_len=pred_len)

    # Lane-dense channel tiling: pad N up to a multiple of the lane tile so
    # stores are unmasked full-lane vst's.  Padded columns are zeros; columns
    # are independent so they never contaminate real outputs (sliced off).
    tile_n = min(512, _round_up(N, 128))
    n_pad = _round_up(N, tile_n)
    x = x_enc.astype(jnp.float32)
    if n_pad != N:
        x = jnp.pad(x, ((0, 0), (0, 0), (0, n_pad - N)))

    grid = (B, n_pad // tile_n)
    out = pl.pallas_call(
        piformer_kernel,
        out_shape=jax.ShapeDtypeStruct((B, pred_len, n_pad), jnp.float32),
        grid=grid,
        in_specs=[
            # (B, L, N_pad): one batch element, one lane tile per grid step.
            pl.BlockSpec((None, L, tile_n), lambda b, n: (b, 0, n)),
            # Small collapsed parameters, resident across the whole grid
            # (constant index_map -> no re-DMA between consecutive steps).
            pl.BlockSpec((pred_len, L), lambda b, n: (0, 0)),
            pl.BlockSpec((pred_len, 1), lambda b, n: (0, 0)),
        ],
        out_specs=pl.BlockSpec((None, pred_len, tile_n), lambda b, n: (b, 0, n)),
        compiler_params=pltpu.CompilerParams(
            dimension_semantics=("parallel", "parallel")),
    )(x, M_eff, c_eff)
    return out[:, :, :N]


def piformer_reference(x_enc, W_base, b_base, coefs, *, period_len, pred_len):
    """Plain-JAX reimplementation of the torch forecast() for validation."""
    B, L, N = x_enc.shape
    sx, sy = L // period_len, pred_len // period_len
    means = jnp.mean(x_enc, axis=1, keepdims=True)
    xc = x_enc - means
    var = jnp.mean(xc * xc, axis=1, keepdims=True)
    stdev = jnp.sqrt(var + 1e-5)
    xn = xc / stdev

    def base(z):                                            # (B, P, N)
        return jnp.einsum('ts,bsn->btn', W_base, z) + b_base[None, :, None]

    x_res = []
    lvl0 = []
    for k in range(sx):
        seg = xn[:, k * period_len:(k + 1) * period_len, :]
        for _ in range(sx - k):
            seg = base(seg)
        lvl0.append(seg)
    x_res.append(lvl0)
    for l in range(1, sy):
        x_res.append([base(z) for z in x_res[l - 1]])

    parts = []
    for j in range(sy):
        acc = jnp.zeros((B, period_len, N), jnp.float32)
        for k in range(sx):
            acc = acc + coefs[j, k] * x_res[j][k]
        acc = acc + coefs[j, sx]
        parts.append(acc)
    dec = jnp.concatenate(parts, axis=1)
    dec = dec * stdev[:, 0:1, :] + means[:, 0:1, :]
    return dec[:, -pred_len:, :]


if __name__ == "__main__":
    # Small deterministic case exercising the lane-padding path (N=40 < 128).
    B, N = 2, 40
    seq_len, pred_len, label_len, period_len = 16, 8, 4, 4
    seg_num_x = seq_len // period_len
    seg_num_y = pred_len // period_len

    key = jax.random.PRNGKey(0)
    k1, k2, k3, k4, k5, k6, k7 = jax.random.split(key, 7)

    x_enc = jax.random.normal(k1, (B, seq_len, N), jnp.float32)
    x_mark_enc = jax.random.normal(k2, (B, seq_len, 4), jnp.float32)
    x_dec = jax.random.normal(k3, (B, label_len + pred_len, N), jnp.float32)
    x_mark_dec = jax.random.normal(k4, (B, label_len + pred_len, 4),
                                   jnp.float32)

    # Deterministic synthetic parameters: contractive base_model so repeated
    # applications stay well-conditioned; new_encoders[j] coefficient rows.
    W_base = (0.5 / jnp.sqrt(float(period_len))) * jax.random.normal(
        k5, (period_len, period_len), jnp.float32)
    b_base = 0.1 * jax.random.normal(k6, (period_len,), jnp.float32)
    coefs = 0.5 * jax.random.normal(
        k7, (seg_num_y, seg_num_x + 1), jnp.float32)

    out = piformer_forward(x_enc, x_mark_enc, x_dec, x_mark_dec,
                           W_base, b_base, coefs,
                           period_len=period_len, pred_len=pred_len)
    out = jax.block_until_ready(out)

    ref = piformer_reference(x_enc, W_base, b_base, coefs,
                             period_len=period_len, pred_len=pred_len)
    ref = jax.block_until_ready(ref)

    assert out.shape == (B, pred_len, N), out.shape
    err = float(jnp.max(jnp.abs(out - ref)))
    assert jnp.allclose(out, ref, rtol=1e-4, atol=1e-4), err
    print("KERNEL_OK")
</pallas_src>

<mosaic_0001>
module attributes {stable_mosaic.version = 11 : i64} {
  func.func @piformer_kernel(%arg0: i32, %arg1: i32, %arg2: memref<1x16x128xf32, #tpu.memory_space<vmem>>, %arg3: memref<8x16xf32, #tpu.memory_space<vmem>>, %arg4: memref<8x1xf32, #tpu.memory_space<vmem>>, %arg5: memref<1x8x128xf32, #tpu.memory_space<vmem>>) attributes {dimension_semantics = [#tpu.dimension_semantics<parallel>, #tpu.dimension_semantics<parallel>], iteration_bounds = array<i64: 2, 1>, scalar_prefetch = 0 : i64, scratch_operands = 0 : i64, tpu.core_type = #tpu.core_type<tc>, window_params = [{transform_indices = @transform_0, window_bounds = array<i64: 1, 16, 128>}, {pipeline_mode = #tpu.pipeline_mode<synchronous>, transform_indices = @transform_1, window_bounds = array<i64: 8, 16>}, {pipeline_mode = #tpu.pipeline_mode<synchronous>, transform_indices = @transform_2, window_bounds = array<i64: 8, 1>}, {transform_indices = @transform_3, window_bounds = array<i64: 1, 8, 128>}]} {
    %c0 = arith.constant 0 : index
    %c0_0 = arith.constant 0 : index
    %c0_1 = arith.constant 0 : index
    %0 = vector.load %arg2[%c0, %c0_0, %c0_1] : memref<1x16x128xf32, #tpu.memory_space<vmem>>, vector<1x16x128xf32>
    %1 = vector.shape_cast %0 : vector<1x16x128xf32> to vector<16x128xf32>
    %cst = arith.constant dense<0.000000e+00> : vector<128xf32>
    %2 = vector.multi_reduction <add>, %1, %cst [0] : vector<16x128xf32> to vector<128xf32>
    %3 = vector.shape_cast %2 : vector<128xf32> to vector<1x128xf32>
    %cst_2 = arith.constant 1.600000e+01 : f32
    %4 = vector.broadcast %cst_2 : f32 to vector<1x128xf32>
    %5 = arith.divf %3, %4 : vector<1x128xf32>
    %6 = vector.broadcast %5 : vector<1x128xf32> to vector<16x128xf32>
    %7 = arith.subf %1, %6 : vector<16x128xf32>
    %8 = arith.mulf %7, %7 : vector<16x128xf32>
    %cst_3 = arith.constant dense<0.000000e+00> : vector<128xf32>
    %9 = vector.multi_reduction <add>, %8, %cst_3 [0] : vector<16x128xf32> to vector<128xf32>
    %10 = vector.shape_cast %9 : vector<128xf32> to vector<1x128xf32>
    %cst_4 = arith.constant 1.600000e+01 : f32
    %11 = vector.broadcast %cst_4 : f32 to vector<1x128xf32>
    %12 = arith.divf %10, %11 : vector<1x128xf32>
    %cst_5 = arith.constant 9.99999974E-6 : f32
    %13 = vector.broadcast %cst_5 : f32 to vector<1x128xf32>
    %14 = arith.addf %12, %13 : vector<1x128xf32>
    %15 = math.sqrt %14 : vector<1x128xf32>
    %c0_6 = arith.constant 0 : index
    %c0_7 = arith.constant 0 : index
    %16 = vector.load %arg3[%c0_6, %c0_7] : memref<8x16xf32, #tpu.memory_space<vmem>>, vector<8x16xf32>
    %cst_8 = arith.constant dense<0.000000e+00> : vector<8x128xf32>
    %17 = tpu.matmul %16, %7, %cst_8 {dimension_numbers = #tpu.dot_dimension_numbers<[1], [0], [0], [1], [0, 0, 1, 1], [], []>} : vector<8x16xf32>, vector<16x128xf32>, vector<8x128xf32> -> vector<8x128xf32>
    %c0_9 = arith.constant 0 : index
    %c0_10 = arith.constant 0 : index
    %18 = vector.load %arg4[%c0_9, %c0_10] : memref<8x1xf32, #tpu.memory_space<vmem>>, vector<8x1xf32>
    %19 = vector.broadcast %18 : vector<8x1xf32> to vector<8x128xf32>
    %20 = vector.broadcast %15 : vector<1x128xf32> to vector<8x128xf32>
    %21 = arith.mulf %19, %20 : vector<8x128xf32>
    %22 = arith.addf %17, %21 : vector<8x128xf32>
    %23 = vector.broadcast %5 : vector<1x128xf32> to vector<8x128xf32>
    %24 = arith.addf %22, %23 : vector<8x128xf32>
    %c0_11 = arith.constant 0 : index
    %c0_12 = arith.constant 0 : index
    %c0_13 = arith.constant 0 : index
    %25 = vector.load %arg5[%c0_11, %c0_12, %c0_13] : memref<1x8x128xf32, #tpu.memory_space<vmem>>, vector<1x8x128xf32>
    %26 = vector.shape_cast %25 : vector<1x8x128xf32> to vector<8x128xf32>
    %27 = vector.shape_cast %24 : vector<8x128xf32> to vector<1x8x128xf32>
    tpu.vector_store %arg5[%c0_11, %c0_12, %c0_13], %27 {strides = array<i32>} : memref<1x8x128xf32, #tpu.memory_space<vmem>>, vector<1x8x128xf32>,
    return
  }
  func.func @transform_0(%arg0: i32, %arg1: i32) -> (i32, i32, i32) {
    %c0_i32 = arith.constant 0 : i32
    %c0_i32_0 = arith.constant 0 : i32
    return %arg0, %c0_i32, %arg1 : i32, i32, i32
  }
  func.func @transform_1(%arg0: i32, %arg1: i32) -> (i32, i32) {
    %c0_i32 = arith.constant 0 : i32
    %c0_i32_0 = arith.constant 0 : i32
    %c0_i32_1 = arith.constant 0 : i32
    return %c0_i32, %c0_i32_0 : i32, i32
  }
  func.func @transform_2(%arg0: i32, %arg1: i32) -> (i32, i32) {
    %c0_i32 = arith.constant 0 : i32
    %c0_i32_0 = arith.constant 0 : i32
    %c0_i32_1 = arith.constant 0 : i32
    return %c0_i32, %c0_i32_0 : i32, i32
  }
  func.func @transform_3(%arg0: i32, %arg1: i32) -> (i32, i32, i32) {
    %c0_i32 = arith.constant 0 : i32
    %c0_i32_0 = arith.constant 0 : i32
    return %arg0, %c0_i32, %arg1 : i32, i32, i32
  }
}

</mosaic_0001>

<llo_original>
// kernel: piformer_forward.1
$region0: #{piformer_forward.1}
  #allocation0 [shape = 'u32[]', space=smem, size = 0x4, offset = 0x4, fixed_abs, tag = 'smem constant byte address 0x4 - core index']
  #allocation1 [shape = 'u32[144,128]{1,0:T(1,128)}', space=vmem, size = 0x12000, scoped, tag = 'internal scratch']
  %s0 = inlined_call_operand.vmem [shape: f32[2,16,128], index: 0, kind: input, shape index: {}]
  %s1 = inlined_call_operand.vmem [shape: f32[8,16], index: 1, kind: input, shape index: {}]
  %s2 = inlined_call_operand.vmem [shape: f32[8,1], index: 2, kind: input, shape index: {}]
  %s3 = inlined_call_operand.hbm [shape: f32[2,8,128], index: 3, kind: output, shape index: {}]
  %s4 = sld [smem:[#allocation0]]
  $region45: #{piformer_forward.1} parent=0
    _
  %s6 = ssub.s32 1, %s4
  %s7 = scalar_select 0, %s6, %s4
  $region1: #{piformer_forward.1} parent=0
    #allocation2 [shape = 'u8[8192]{0}', space=vmem, size = 0x2000, scoped, tag = 'output window, operand 0']
    #allocation3 [shape = 's32[2]{0}', space=sflag, size = 0x8, scoped, tag = 'scoped memory for piformer_forward.1']
    %8 = vsyncpa [#allocation3], 0
    %s9 = scalar_lea.sflag [#allocation3], 1
    %10 = vsyncpa %s9, 0
    loop: start=0, step=1, limit=4
    $region2: #{piformer_forward.1} parent=1 // loop_pre_header
      _
    $region3: #{piformer_forward.1} parent=1 // loop_header
      %s12 = sphi 0, %s16
      %p13 = scmp.ge.s32.totalorder %s12, 4
      %s19 = sphi 0, %s31
      %s20 = sphi 0, %s27
      %s21 = sphi 0, %s19
      %s22 = sphi 0, %s20
      %s23 = sphi 0, %s21
      %s24 = sphi 0, %s22
      %s36 = sphi 0, %s38
      %s39 = sphi 0, %s36
      %s40 = sphi 0, %s39
      %s56 = sphi 0, %s40
      %s60 = sphi 0, %s60
      %s62 = sphi 0, %s60
      %s63 = sphi 0, %s62
      %s77 = sphi 0, %s63
      %s81 = sphi 0, %s81
      %s83 = sphi 0, %s81
      %s84 = sphi 0, %s83
      %s98 = sphi 0, %s84
      %s106 = sphi 0, %s108
      %s109 = sphi 0, %s106
      %s110 = sphi 0, %s109
      %s126 = sphi 0, %s110
    $region4: #{piformer_forward.1} parent=1 // loop_header_branch
      %15 = sbr.rel (%p13) target = $region8
    $region5: #{piformer_forward.1} parent=1 // loop_body
      %s17 = ssub.s32 %s12, 1
      %s18 = ssub.s32 %s12, 2
      %s25 = sadd.s32 1, %s20
      %p26 = scmp.ge.s32.totalorder %s25, 1
      %s27 = scalar_select %p26, 0, %s25
      %s28 = sadd.s32 1, %s19
      %s29 = scalar_select %p26, %s28, %s19
      %p30 = scmp.ge.s32.totalorder %s29, 2
      %s31 = scalar_select %p30, 0, %s29
      %s32 = ssub.s32 %s19, %s31
      %s33 = ssub.s32 %s20, %s27
      %s34 = sor.u32 %s32, %s33
      %p35 = scmp.eq.s32.totalorder %s34, 0
      %s37 = sadd.s32 %s36, 1
      %s38 = scalar_select %p35, %s36, %s37
      %p41 = pneg %p35
      %p42 = scmp.eq.s32.totalorder %s12, 1
      %p43 = por %p41, %p42
      %p44 = scmp.ne.s32.totalorder %s36, %s39
      %p45 = scmp.eq.s32.totalorder %s12, 0
      %p46 = por %p44, %p45
      %p47 = scmp.ne.s32.totalorder %s36, %s39
      %p48 = scmp.eq.s32.totalorder %s17, 1
      %p49 = por %p47, %p48
      %p50 = scmp.ne.s32.totalorder %s39, %s40
      %p51 = scmp.eq.s32.totalorder %s17, 0
      %p52 = por %p50, %p51
      %p53 = scmp.ne.s32.totalorder %s39, %s40
      %p54 = scmp.eq.s32.totalorder %s18, 1
      %p55 = por %p53, %p54
      %p57 = scmp.ne.s32.totalorder %s40, %s56
      %p58 = scmp.eq.s32.totalorder %s18, 0
      %p59 = por %p57, %p58
      %s61 = sadd.s32 %s60, 1
      %p64 = scmp.eq.s32.totalorder %s12, 1
      %p65 = scmp.ne.s32.totalorder %s60, %s62
      %p66 = scmp.eq.s32.totalorder %s12, 0
      %p67 = por %p65, %p66
      %p68 = scmp.ne.s32.totalorder %s60, %s62
      %p69 = scmp.eq.s32.totalorder %s17, 1
      %p70 = por %p68, %p69
      %p71 = scmp.ne.s32.totalorder %s62, %s63
      %p72 = scmp.eq.s32.totalorder %s17, 0
      %p73 = por %p71, %p72
      %p74 = scmp.ne.s32.totalorder %s62, %s63
      %p75 = scmp.eq.s32.totalorder %s18, 1
      %p76 = por %p74, %p75
      %p78 = scmp.ne.s32.totalorder %s63, %s77
      %p79 = scmp.eq.s32.totalorder %s18, 0
      %p80 = por %p78, %p79
      %s82 = sadd.s32 %s81, 1
      %p85 = scmp.eq.s32.totalorder %s12, 1
      %p86 = scmp.ne.s32.totalorder %s81, %s83
      %p87 = scmp.eq.s32.totalorder %s12, 0
      %p88 = por %p86, %p87
      %p89 = scmp.ne.s32.totalorder %s81, %s83
      %p90 = scmp.eq.s32.totalorder %s17, 1
      %p91 = por %p89, %p90
      %p92 = scmp.ne.s32.totalorder %s83, %s84
      %p93 = scmp.eq.s32.totalorder %s17, 0
      %p94 = por %p92, %p93
      %p95 = scmp.ne.s32.totalorder %s83, %s84
      %p96 = scmp.eq.s32.totalorder %s18, 1
      %p97 = por %p95, %p96
      %p99 = scmp.ne.s32.totalorder %s84, %s98
      %p100 = scmp.eq.s32.totalorder %s18, 0
      %p101 = por %p99, %p100
      %s102 = ssub.s32 %s19, %s31
      %s103 = ssub.s32 %s20, %s27
      %s104 = sor.u32 %s102, %s103
      %p105 = scmp.eq.s32.totalorder %s104, 0
      %s107 = sadd.s32 %s106, 1
      %s108 = scalar_select %p105, %s106, %s107
      %p111 = pneg %p105
      %p112 = scmp.eq.s32.totalorder %s12, 1
      %p113 = por %p111, %p112
      %p114 = scmp.ne.s32.totalorder %s106, %s109
      %p115 = scmp.eq.s32.totalorder %s12, 0
      %p116 = por %p114, %p115
      %p117 = scmp.ne.s32.totalorder %s106, %s109
      %p118 = scmp.eq.s32.totalorder %s17, 1
      %p119 = por %p117, %p118
      %p120 = scmp.ne.s32.totalorder %s109, %s110
      %p121 = scmp.eq.s32.totalorder %s17, 0
      %p122 = por %p120, %p121
      %p123 = scmp.ne.s32.totalorder %s109, %s110
      %p124 = scmp.eq.s32.totalorder %s18, 1
      %p125 = por %p123, %p124
      %p127 = scmp.ne.s32.totalorder %s110, %s126
      %p128 = scmp.eq.s32.totalorder %s18, 0
      %p129 = por %p127, %p128
      %p130 = scmp.le.s32.totalorder 1, %s12
      %p131 = scmp.lt.s32.totalorder %s12, 3
      %p132 = pnand %p130, %p131
      %p133 = pneg %p132
      // Predicated region
      $region9: #{piformer_forward.1} parent=5 // pred_check
        _
      $region10: #{piformer_forward.1} parent=5 // pred_check_branch
        %135 = sbr.rel (%p132) target = $region12
      $region11: #{piformer_forward.1} parent=5 // pred_region
        %s136 = ssub.s32 %s12, 1
        // Predicated region
        $region13: #{piformer_forward.1} parent=11 // pred_check
          %p137 = pneg %p73
        $region14: #{piformer_forward.1} parent=11 // pred_check_branch
          %139 = sbr.rel (%p137) target = $region16
        $region15: #{piformer_forward.1} parent=11 // pred_region
          _
        $region16: #{piformer_forward.1} parent=11 // pred_fallthru
          _
        // Predicated region
        $region17: #{piformer_forward.1} parent=11 // pred_check
          %p140 = pneg %p94
        $region18: #{piformer_forward.1} parent=11 // pred_check_branch
          %142 = sbr.rel (%p140) target = $region20
        $region19: #{piformer_forward.1} parent=11 // pred_region
          _
        $region20: #{piformer_forward.1} parent=11 // pred_fallthru
          _
      $region12: #{piformer_forward.1} parent=5 // pred_fallthru
        _
      %p143 = scmp.lt.s32.totalorder %s12, 2
      // Predicated region
      $region21: #{piformer_forward.1} parent=5 // pred_check
        %p144 = pneg %p143
      $region22: #{piformer_forward.1} parent=5 // pred_check_branch
        %146 = sbr.rel (%p144) target = $region24
      $region23: #{piformer_forward.1} parent=5 // pred_region
        // Predicated region
        $region25: #{piformer_forward.1} parent=23 // pred_check
          %p147 = pneg %p46
        $region26: #{piformer_forward.1} parent=23 // pred_check_branch
          %149 = sbr.rel (%p147) target = $region28
        $region27: #{piformer_forward.1} parent=23 // pred_region
          %p150 = scmp.lt.s32.totalorder %s19, 1
          %s151 = scalar_select %p150, %s19, 1
          %p152 = scmp.lt.s32.totalorder %s20, 0
          %s153 = scalar_select %p152, %s20, 0
          %s154 = smul.addr %s151, 2
          %s155 = sadd.s32 %s153, %s154
          %s156 = smul.addr %s155, 8
          %s157 = scalar_lea.vmem %s0, %s156
        $region28: #{piformer_forward.1} parent=23 // pred_fallthru
          _
      $region24: #{piformer_forward.1} parent=5 // pred_fallthru
        _
      %p158 = scmp.le.s32.totalorder 1, %s12
      %p159 = scmp.lt.s32.totalorder %s12, 3
      %p160 = pnand %p158, %p159
      %p161 = pneg %p160
      // Predicated region
      $region29: #{piformer_forward.1} parent=5 // pred_check
        _
      $region30: #{piformer_forward.1} parent=5 // pred_check_branch
        %163 = sbr.rel (%p160) target = $region32
      $region31: #{piformer_forward.1} parent=5 // pred_region
        %s164 = ssub.s32 %s12, 1
        %p165 = scmp.lt.s32.totalorder %s21, 1
        %s166 = scalar_select %p165, %s21, 1
        %p167 = scmp.lt.s32.totalorder %s22, 0
        %s168 = scalar_select %p167, %s22, 0
        %s169 = smul.addr %s166, 2
        %s170 = sadd.s32 %s168, %s169
        %s171 = smul.addr %s170, 8
        %s172 = scalar_lea.vmem %s0, %s171
        %p173 = pneg %p52
        %p174 = pneg %p49
        %p175 = pneg %p73
        %p176 = pneg %p70
        %p177 = pneg %p94
        %p178 = pneg %p91
        %p179 = pneg %p122
        %p180 = pneg %p119
        %s181 = sand.u32 %s109, 1
        %s182 = scalar_lea.sflag [#allocation3], %s181
        %s183 = sand.u32 %s109, 1
        %s184 = smul.addr %s183, 8
        %s185 = scalar_lea.vmem [#allocation2], %s184
        %p186 = scmp.lt.s32.totalorder %s21, 1
        %s187 = scalar_select %p186, %s21, 1
        %p188 = scmp.lt.s32.totalorder %s22, 0
        %s189 = scalar_select %p188, %s22, 0
        %s190 = smul.addr %s187, 2
        %s191 = sadd.s32 %s189, %s190
        %s192 = smul.addr %s191, 8
        %s193 = scalar_lea.vmem %s0, %s192
        %v194 = vld [vmem:[%s193] sm:$0xff]
        %v195 = vld [vmem:[%s193 + $0x8] sm:$0xff]
        %v196 = vadd.f32 %v194, %v195
        %v197 = vrot.slane %v196, 4
        %v198 = vadd.f32 %v196, %v197
        %v199 = vrot.slane %v198, 2
        %v200 = vadd.f32 %v198, %v199
        %v201 = vrot.slane %v200, 1
        %v202 = vadd.f32 %v200, %v201
        %v203 = vrcp.pop 16.0
        %v204 = vmul.f32 %v202, %v203
        %v205 = vsub.f32 %v194, %v204
        %v206 = vsub.f32 %v195, %v204
        %v207 = vmul.f32 %v205, %v205
        %v208 = vmul.f32 %v206, %v206
        %v209 = vadd.f32 %v207, %v208
        %v210 = vrot.slane %v209, 4
        %v211 = vadd.f32 %v209, %v210
        %v212 = vrot.slane %v211, 2
        %v213 = vadd.f32 %v211, %v212
        %v214 = vrot.slane %v213, 1
        %v215 = vadd.f32 %v213, %v214
        %v216 = vmul.f32 %v215, %v203
        %v217 = vadd.f32 %v216, 1e-05
        %v218 = vrsqrt.pop %v217
        %v219 = vmul.f32 %v217, %v218
        %vm220 = vcmp.eq.f32.partialorder %v217, inf
        %v221 = vsel %vm220, %v217, %v219
        %vm222 = vcmp.eq.f32.partialorder %v217, 0.0
        %v223 = vand.u32 %v217, 2147483648
        %v224 = vsel %vm222, %v223, %v221
        %v225 = vld [vmem:[%s1] sm:$0xff]
        %v226 = vld [vmem:[%s2] sm:$0xff]
        %228 = vset.pattern.permute.xlu0 0
        %229 = vperm.xlu0 %228, %v226
        %v230 = vpop.permute.xlu0 %229
        %v232 = vmul.f32 %v230, %v224
        %vm233 = vcmask 130048
        %v235 = vsel %vm233, %v225, 0
        %237 = vmatprep.subr.mxu0 0.0
        %238 = vmatpush1.msra.mxu0 0.0
        %239 = vmatprep.subr.mxu0 0.0
        %240 = vmatpush1.msra.mxu0 0.0
        %241 = vmatprep.subr.mxu0 0.0
        %242 = vmatpush1.msra.mxu0 0.0
        %243 = vmatprep.subr.mxu0 0.0
        %244 = vmatpush1.msra.mxu0 0.0
        %245 = vmatprep.subr.mxu0 0.0
        %246 = vmatpush1.msra.mxu0 0.0
        %247 = vmatprep.subr.mxu0 0.0
        %248 = vmatpush1.msra.mxu0 0.0
        %249 = vmatprep.subr.mxu0 0.0
        %250 = vmatpush1.msra.mxu0 0.0
        %251 = vmatprep.subr.mxu0 0.0
        %252 = vmatpush1.msra.mxu0 0.0
        %253 = vmatprep.subr.mxu0 0.0
        %254 = vmatpush1.msra.mxu0 0.0
        %255 = vmatprep.subr.mxu0 0.0
        %256 = vmatpush1.msra.mxu0 0.0
        %257 = vmatprep.subr.mxu0 0.0
        %258 = vmatpush1.msra.mxu0 0.0
        %259 = vmatprep.subr.mxu0 0.0
        %260 = vmatpush1.msra.mxu0 0.0
        %261 = vmatprep.subr.mxu0 0.0
        %262 = vmatpush1.msra.mxu0 0.0
        %263 = vmatprep.subr.mxu0 0.0
        %264 = vmatpush1.msra.mxu0 0.0
        %265 = vmatprep.subr.mxu0 0.0
        %266 = vmatpush1.msra.mxu0 %v206
        %267 = vmatprep.subr.mxu0 0.0
        %268 = vmatpush1.msra.mxu0 %v205
        %269 = vmatprep.subr.mxu0 0.0
        %270 = vmatpush2.msra.mxu0 0.0
        %271 = vmatprep.subr.mxu0 0.0
        %272 = vmatpush2.msra.mxu0 0.0
        %273 = vmatprep.subr.mxu0 0.0
        %274 = vmatpush2.msra.mxu0 0.0
        %275 = vmatprep.subr.mxu0 0.0
        %276 = vmatpush2.msra.mxu0 0.0
        %277 = vmatprep.subr.mxu0 0.0
        %278 = vmatpush2.msra.mxu0 0.0
        %279 = vmatprep.subr.mxu0 0.0
        %280 = vmatpush2.msra.mxu0 0.0
        %281 = vmatprep.subr.mxu0 0.0
        %282 = vmatpush2.msra.mxu0 0.0
        %283 = vmatprep.subr.mxu0 0.0
        %284 = vmatpush2.msra.mxu0 0.0
        %285 = vmatprep.subr.mxu0 0.0
        %286 = vmatpush2.msra.mxu0 0.0
        %287 = vmatprep.subr.mxu0 0.0
        %288 = vmatpush2.msra.mxu0 0.0
        %289 = vmatprep.subr.mxu0 0.0
        %290 = vmatpush2.msra.mxu0 0.0
        %291 = vmatprep.subr.mxu0 0.0
        %292 = vmatpush2.msra.mxu0 0.0
        %293 = vmatprep.subr.mxu0 0.0
        %294 = vmatpush2.msra.mxu0 0.0
        %295 = vmatprep.subr.mxu0 0.0
        %296 = vmatpush2.msra.mxu0 0.0
        %297 = vmatprep.subr.mxu0 0.0
        %298 = vmatpush2.msra.mxu0 0.0
        %299 = vmatprep.subr.mxu0 0.0
        %300 = vmatpush2.msra.mxu0 0.0
        %301 = vmatprep.mubr.f32.mxu0 0.0
        %302 = vmatmul.mubr.f32.gmra.mxu0 %v235
        %v303 = vpop.f32.mrf.mxu0
        %v304 = vadd.f32 %v232, %v303
        %v305 = vpop.f32.mrf.mxu0
        %306 = vdwg.mxu0
        %v307 = vadd.f32 %v304, %v204
        %308 = vst [vmem:[%s185] sm:$0xff] %v307
        %s309 = sand.u32 %s109, 1
        %s310 = scalar_lea.sflag [#allocation3], %s309
        %s311 = sand.u32 %s109, 1
        %s312 = smul.addr %s311, 8
        %s313 = scalar_lea.vmem [#allocation2], %s312
        // Predicated region
        $region33: #{piformer_forward.1} parent=31 // pred_check
          %p314 = pneg %p119
        $region34: #{piformer_forward.1} parent=31 // pred_check_branch
          %316 = sbr.rel (%p314) target = $region36
        $region35: #{piformer_forward.1} parent=31 // pred_region
          %s318 = ssub.s32 128, 128
          %319 = vsyncadd %s310, %s318
          %s320 = sadd.s32 %s22, %s21
          %s321 = smul.addr %s320, 128
          %s322 = scalar_lea.hbm %s3, %s321
          %s324 = sshll.u32 %s313, 4
          %s325 = int_to_ptr.vmem [resolvable:$true] %s324
          %327 = dma.vmem_to_hbm [thread:$0]  %s325, 128, %s322, %s310
        $region36: #{piformer_forward.1} parent=31 // pred_fallthru
          _
      $region32: #{piformer_forward.1} parent=5 // pred_fallthru
        _
      %p328 = scmp.le.s32.totalorder 2, %s12
      // Predicated region
      $region37: #{piformer_forward.1} parent=5 // pred_check
        %p329 = pneg %p328
      $region38: #{piformer_forward.1} parent=5 // pred_check_branch
        %331 = sbr.rel (%p329) target = $region40
      $region39: #{piformer_forward.1} parent=5 // pred_region
        %s332 = ssub.s32 %s12, 2
        // Predicated region
        $region41: #{piformer_forward.1} parent=39 // pred_check
          %p333 = pneg %p125
        $region42: #{piformer_forward.1} parent=39 // pred_check_branch
          %335 = sbr.rel (%p333) target = $region44
        $region43: #{piformer_forward.1} parent=39 // pred_region
          %s336 = sand.u32 %s110, 1
          %s337 = scalar_lea.sflag [#allocation3], %s336
          %s338 = sand.u32 %s110, 1
          %s339 = smul.addr %s338, 8
          %s340 = scalar_lea.vmem [#allocation2], %s339
          %341 = dma.done %s337, 128
        $region44: #{piformer_forward.1} parent=39 // pred_fallthru
          _
      $region40: #{piformer_forward.1} parent=5 // pred_fallthru
        _
    $region6: #{piformer_forward.1} parent=1 // loop_footer
      %s16 = sadd.s32 1, %s12
    $region7: #{piformer_forward.1} parent=1 // loop_footer_branch
      %11 = sbr.rel target = $region3
    $region8: #{piformer_forward.1} parent=1 // loop_exit
      _
    %342 = vsyncpa [#allocation3], 1
    %s343 = scalar_lea.sflag [#allocation3], 1
    %344 = vsyncpa %s343, 1

</llo_original>
